<compile_context>
chip_gen: v7x
topology: tpu7x:2x2x1
jax: 0.10.0
libtpu: 0.0.40
codegen_flags: <defaults>
</compile_context>

<pallas_src>
import functools

import jax
import jax.numpy as jnp
from jax import lax
from jax.experimental import pallas as pl
from jax.experimental.pallas import tpu as pltpu  # noqa: F401  (not needed on the gridless path)

# ----------------------------- model constants ------------------------------
EMBED = 6
HEADS = 2
HEAD_DIM = EMBED // HEADS
FF_HIDDEN = 24
SEQ = 3
LN_EPS = 1e-5

# Packed-weight slab layout (rows x cols = 24 x 66), column offsets:
QKV_COLS = (2 * HEADS + 1) * EMBED          # [q*m0 | q*m1 | k | v*m0 | v*m1] = 30
_C_QKV = 0
_C_WO = _C_QKV + QKV_COLS                    # 30
_C_W1 = _C_WO + EMBED                        # 36
_C_W2 = _C_W1 + FF_HIDDEN                    # 60
W_SLAB_ROWS = max(EMBED, FF_HIDDEN)          # 24  (multiple of 8)
W_SLAB_COLS = _C_W2 + EMBED                  # 66

# Packed-vector slab layout (8 rows x 30 cols), row indices:
_R_BQKV, _R_BO, _R_BF1, _R_BF2, _R_G1, _R_BE1, _R_G2, _R_BE2 = range(8)
V_SLAB_ROWS = 8
V_SLAB_COLS = QKV_COLS                       # 30 >= FF_HIDDEN


def _layer_norm(t, gamma, beta):
    # PyTorch nn.LayerNorm over last dim: biased variance, eps inside sqrt.
    mean = jnp.mean(t, axis=-1, keepdims=True)
    var = jnp.mean(jnp.square(t - mean), axis=-1, keepdims=True)
    return (t - mean) * lax.rsqrt(var + LN_EPS) * gamma + beta


# --------------------------------- kernel -----------------------------------
def encoder_block_kernel(x_ref, w_ref, vec_ref, out_ref, *, seq):
    rows = x_ref.shape[0]                     # B * seq  (static)
    x = x_ref[...]                            # (R, E)
    W = w_ref[...]                            # (24, 66) packed weights
    V = vec_ref[...]                          # (8, 30)  packed biases / LN params

    # Static slices of the packed slabs (register-level, zero DMA cost).
    w_qkv = W[0:EMBED, _C_QKV:_C_QKV + QKV_COLS]          # (E, 5E)
    w_o = W[0:EMBED, _C_WO:_C_WO + EMBED]                  # (E, E)
    w_1 = W[0:EMBED, _C_W1:_C_W1 + FF_HIDDEN]              # (E, FF)
    w_2 = W[0:FF_HIDDEN, _C_W2:_C_W2 + EMBED]              # (FF, E)

    b_qkv = V[_R_BQKV:_R_BQKV + 1, 0:QKV_COLS]
    b_o = V[_R_BO:_R_BO + 1, 0:EMBED]
    b_f1 = V[_R_BF1:_R_BF1 + 1, 0:FF_HIDDEN]
    b_f2 = V[_R_BF2:_R_BF2 + 1, 0:EMBED]
    g1 = V[_R_G1:_R_G1 + 1, 0:EMBED]
    be1 = V[_R_BE1:_R_BE1 + 1, 0:EMBED]
    g2 = V[_R_G2:_R_G2 + 1, 0:EMBED]
    be2 = V[_R_BE2:_R_BE2 + 1, 0:EMBED]

    # ---- fused, head-pre-masked Q/K/V projection (one MXU push) ------------
    proj = jnp.dot(x, w_qkv, preferred_element_type=jnp.float32) + b_qkv
    k = proj[:, HEADS * EMBED:(HEADS + 1) * EMBED]         # unmasked keys

    # ---- per-item block-diagonal attention mask (only needed when B > 1) ---
    n_items = rows // seq
    if n_items > 1:
        row_item = lax.broadcasted_iota(jnp.int32, (rows, rows), 0) // seq
        col_item = lax.broadcasted_iota(jnp.int32, (rows, rows), 1) // seq
        same_item = row_item == col_item

    # ---- multi-head self-attention ------------------------------------------
    # q_h / v_h are already masked to their head's lanes (baked into w_qkv), so
    #   energy_h = q_h . k^T        (contract last dims -> no transpose)
    #   ctx     += softmax(energy_h) @ v_h   (lands at head-h lanes)
    scale = 1.0 / (HEAD_DIM ** 0.5)
    ctx = None
    for h in range(HEADS):                                   # static, HEADS = 2
        q_h = proj[:, h * EMBED:(h + 1) * EMBED]
        v_h = proj[:, (HEADS + 1 + h) * EMBED:(HEADS + 2 + h) * EMBED]
        energy = lax.dot_general(q_h, k, (((1,), (1,)), ((), ())),
                                 preferred_element_type=jnp.float32) * scale
        if n_items > 1:
            energy = jnp.where(same_item, energy, -jnp.inf)
        m = jnp.max(energy, axis=-1, keepdims=True)
        p = jnp.exp(energy - m)
        attn = p / jnp.sum(p, axis=-1, keepdims=True)        # exact softmax
        part = jnp.dot(attn, v_h, preferred_element_type=jnp.float32)
        ctx = part if ctx is None else ctx + part            # heads occupy disjoint lanes

    attn_out = jnp.dot(ctx, w_o, preferred_element_type=jnp.float32) + b_o

    # ---- Add & Norm 1 --------------------------------------------------------
    h1 = _layer_norm(x + attn_out, g1, be1)

    # ---- Feed-forward network ------------------------------------------------
    ff = jnp.dot(h1, w_1, preferred_element_type=jnp.float32) + b_f1
    ff = jnp.maximum(ff, 0.0)
    ff = jnp.dot(ff, w_2, preferred_element_type=jnp.float32) + b_f2

    # ---- Add & Norm 2 --------------------------------------------------------
    out_ref[...] = _layer_norm(h1 + ff, g2, be2)


# ------------------------------ param packing --------------------------------
def _head_col_mask(h):
    m = jnp.zeros((EMBED,), jnp.float32)
    return m.at[h * HEAD_DIM:(h + 1) * HEAD_DIM].set(1.0)


def _prepare_params(p):
    """Pre-bake per-head masks into the QKV weights and pack everything into
    two slabs (wrapper-time, outside the kernel)."""
    w_cols, b_cols = [], []
    for h in range(HEADS):                                   # masked queries
        m = _head_col_mask(h)
        w_cols.append(p["wq"] * m[None, :]); b_cols.append(p["bq"] * m)
    w_cols.append(p["wk"]); b_cols.append(p["bk"])           # unmasked keys
    for h in range(HEADS):                                   # masked values
        m = _head_col_mask(h)
        w_cols.append(p["wv"] * m[None, :]); b_cols.append(p["bv"] * m)
    w_qkv = jnp.concatenate(w_cols, axis=1)                  # (E, 5E)
    b_qkv = jnp.concatenate(b_cols)                          # (5E,)

    w_slab = jnp.zeros((W_SLAB_ROWS, W_SLAB_COLS), jnp.float32)
    w_slab = w_slab.at[0:EMBED, _C_QKV:_C_QKV + QKV_COLS].set(w_qkv)
    w_slab = w_slab.at[0:EMBED, _C_WO:_C_WO + EMBED].set(p["wo"])
    w_slab = w_slab.at[0:EMBED, _C_W1:_C_W1 + FF_HIDDEN].set(p["w1"])
    w_slab = w_slab.at[0:FF_HIDDEN, _C_W2:_C_W2 + EMBED].set(p["w2"])

    v_slab = jnp.zeros((V_SLAB_ROWS, V_SLAB_COLS), jnp.float32)
    v_slab = v_slab.at[_R_BQKV, 0:QKV_COLS].set(b_qkv)
    v_slab = v_slab.at[_R_BO, 0:EMBED].set(p["bo"])
    v_slab = v_slab.at[_R_BF1, 0:FF_HIDDEN].set(p["bf1"])
    v_slab = v_slab.at[_R_BF2, 0:EMBED].set(p["bf2"])
    v_slab = v_slab.at[_R_G1, 0:EMBED].set(p["g1"])
    v_slab = v_slab.at[_R_BE1, 0:EMBED].set(p["be1"])
    v_slab = v_slab.at[_R_G2, 0:EMBED].set(p["g2"])
    v_slab = v_slab.at[_R_BE2, 0:EMBED].set(p["be2"])
    return w_slab, v_slab


# --------------------------------- wrapper -----------------------------------
@jax.jit
def encoder_block_pallas(x, params):
    """x: (B, SEQ, EMBED) float32; params: raw (unfused) weight dict."""
    w_slab, v_slab = _prepare_params(params)
    B, S, E = x.shape
    rows = B * S
    x_flat = x.reshape(rows, E)                # fold batch into the sublane axis

    out_flat = pl.pallas_call(
        functools.partial(encoder_block_kernel, seq=S),
        out_shape=jax.ShapeDtypeStruct((rows, E), jnp.float32),
        # Gridless: whole arrays as single VMEM blocks (block == full array dims).
        in_specs=[
            pl.BlockSpec((rows, E), lambda: (0, 0)),
            pl.BlockSpec((W_SLAB_ROWS, W_SLAB_COLS), lambda: (0, 0)),
            pl.BlockSpec((V_SLAB_ROWS, V_SLAB_COLS), lambda: (0, 0)),
        ],
        out_specs=pl.BlockSpec((rows, E), lambda: (0, 0)),
    )(x_flat, w_slab, v_slab)
    return out_flat.reshape(B, S, E)


# ------------------------------ pure-JAX reference ---------------------------
def encoder_block_ref(x, p):
    """Replicates the PyTorch forward exactly (exact math) for one batch item."""
    q = x @ p["wq"] + p["bq"]
    k = x @ p["wk"] + p["bk"]
    v = x @ p["wv"] + p["bv"]
    outs = []
    for h in range(HEADS):
        sl = slice(h * HEAD_DIM, (h + 1) * HEAD_DIM)
        e = (q[:, sl] @ k[:, sl].T) / (HEAD_DIM ** 0.5)
        a = jax.nn.softmax(e, axis=-1)
        outs.append(a @ v[:, sl])
    attn = jnp.concatenate(outs, axis=-1) @ p["wo"] + p["bo"]

    def ln(t, g, b):
        mu = jnp.mean(t, axis=-1, keepdims=True)
        var = jnp.mean((t - mu) ** 2, axis=-1, keepdims=True)
        return (t - mu) / jnp.sqrt(var + LN_EPS) * g + b

    h1 = ln(x + attn, p["g1"], p["be1"])
    ff = jnp.maximum(h1 @ p["w1"] + p["bf1"], 0.0) @ p["w2"] + p["bf2"]
    return ln(h1 + ff, p["g2"], p["be2"])


def init_params(key):
    ks = jax.random.split(key, 16)
    s, bscale = 0.2, 0.1
    return {
        "wq": jax.random.normal(ks[0], (EMBED, EMBED), jnp.float32) * s,
        "bq": jax.random.normal(ks[1], (EMBED,), jnp.float32) * bscale,
        "wk": jax.random.normal(ks[2], (EMBED, EMBED), jnp.float32) * s,
        "bk": jax.random.normal(ks[3], (EMBED,), jnp.float32) * bscale,
        "wv": jax.random.normal(ks[4], (EMBED, EMBED), jnp.float32) * s,
        "bv": jax.random.normal(ks[5], (EMBED,), jnp.float32) * bscale,
        "wo": jax.random.normal(ks[6], (EMBED, EMBED), jnp.float32) * s,
        "bo": jax.random.normal(ks[7], (EMBED,), jnp.float32) * bscale,
        "g1": 1.0 + jax.random.normal(ks[8], (EMBED,), jnp.float32) * bscale,
        "be1": jax.random.normal(ks[9], (EMBED,), jnp.float32) * bscale,
        "w1": jax.random.normal(ks[10], (EMBED, FF_HIDDEN), jnp.float32) * s,
        "bf1": jax.random.normal(ks[11], (FF_HIDDEN,), jnp.float32) * bscale,
        "w2": jax.random.normal(ks[12], (FF_HIDDEN, EMBED), jnp.float32) * s,
        "bf2": jax.random.normal(ks[13], (EMBED,), jnp.float32) * bscale,
        "g2": 1.0 + jax.random.normal(ks[14], (EMBED,), jnp.float32) * bscale,
        "be2": jax.random.normal(ks[15], (EMBED,), jnp.float32) * bscale,
    }


if __name__ == "__main__":
    # The PyTorch script feeds a fixed (3, 6) tensor; interpret as (batch=1, seq=3, embed=6).
    I = jnp.array(
        [[0.91, 1.84, 2.30, 1.52, 0.75, 0.12],
         [0.68, 1.83, 1.10, 0.60, 1.40, 0.22],
         [1.52, 1.01, 2.64, 1.15, 0.60, 0.30]], dtype=jnp.float32)
    x = I[None]                                # (1, 3, 6)

    params = init_params(jax.random.PRNGKey(0))

    out = jax.block_until_ready(encoder_block_pallas(x, params))

    ref = jax.vmap(lambda xi: encoder_block_ref(xi, params))(x)
    assert out.shape == (1, SEQ, EMBED)
    # Exact softmax / exact LN math -> tight tolerance (was 2e-3 with approx reciprocal).
    assert jnp.allclose(out, ref, atol=1e-4, rtol=1e-4), "mismatch vs reference"
    print("KERNEL_OK")
</pallas_src>

<mosaic_0001>
module attributes {stable_mosaic.version = 11 : i64} {
  func.func @encoder_block_kernel(%arg0: memref<3x6xf32, #tpu.memory_space<vmem>>, %arg1: memref<24x66xf32, #tpu.memory_space<vmem>>, %arg2: memref<8x30xf32, #tpu.memory_space<vmem>>, %arg3: memref<3x6xf32, #tpu.memory_space<vmem>>) attributes {dimension_semantics = [], scalar_prefetch = 0 : i64, scratch_operands = 0 : i64, tpu.core_type = #tpu.core_type<tc>} {
    %c0 = arith.constant 0 : index
    %c0_0 = arith.constant 0 : index
    %0 = vector.load %arg0[%c0, %c0_0] : memref<3x6xf32, #tpu.memory_space<vmem>>, vector<3x6xf32>
    %c0_1 = arith.constant 0 : index
    %c0_2 = arith.constant 0 : index
    %1 = vector.load %arg1[%c0_1, %c0_2] : memref<24x66xf32, #tpu.memory_space<vmem>>, vector<24x66xf32>
    %c0_3 = arith.constant 0 : index
    %c0_4 = arith.constant 0 : index
    %2 = vector.load %arg2[%c0_3, %c0_4] : memref<8x30xf32, #tpu.memory_space<vmem>>, vector<8x30xf32>
    %3 = vector.extract_strided_slice %1 {offsets = [0, 0], sizes = [6, 30], strides = [1, 1]} : vector<24x66xf32> to vector<6x30xf32>
    %4 = vector.extract_strided_slice %1 {offsets = [0, 30], sizes = [6, 6], strides = [1, 1]} : vector<24x66xf32> to vector<6x6xf32>
    %5 = vector.extract_strided_slice %1 {offsets = [0, 36], sizes = [6, 24], strides = [1, 1]} : vector<24x66xf32> to vector<6x24xf32>
    %6 = vector.extract_strided_slice %1 {offsets = [0, 60], sizes = [24, 6], strides = [1, 1]} : vector<24x66xf32> to vector<24x6xf32>
    %7 = vector.extract_strided_slice %2 {offsets = [0, 0], sizes = [1, 30], strides = [1, 1]} : vector<8x30xf32> to vector<1x30xf32>
    %8 = vector.extract_strided_slice %2 {offsets = [1, 0], sizes = [1, 6], strides = [1, 1]} : vector<8x30xf32> to vector<1x6xf32>
    %9 = vector.extract_strided_slice %2 {offsets = [2, 0], sizes = [1, 24], strides = [1, 1]} : vector<8x30xf32> to vector<1x24xf32>
    %10 = vector.extract_strided_slice %2 {offsets = [3, 0], sizes = [1, 6], strides = [1, 1]} : vector<8x30xf32> to vector<1x6xf32>
    %11 = vector.extract_strided_slice %2 {offsets = [4, 0], sizes = [1, 6], strides = [1, 1]} : vector<8x30xf32> to vector<1x6xf32>
    %12 = vector.extract_strided_slice %2 {offsets = [5, 0], sizes = [1, 6], strides = [1, 1]} : vector<8x30xf32> to vector<1x6xf32>
    %13 = vector.extract_strided_slice %2 {offsets = [6, 0], sizes = [1, 6], strides = [1, 1]} : vector<8x30xf32> to vector<1x6xf32>
    %14 = vector.extract_strided_slice %2 {offsets = [7, 0], sizes = [1, 6], strides = [1, 1]} : vector<8x30xf32> to vector<1x6xf32>
    %cst = arith.constant dense<0.000000e+00> : vector<3x30xf32>
    %15 = tpu.matmul %0, %3, %cst {dimension_numbers = #tpu.dot_dimension_numbers<[1], [0], [0], [1], [0, 0, 1, 1], [], []>} : vector<3x6xf32>, vector<6x30xf32>, vector<3x30xf32> -> vector<3x30xf32>
    %16 = vector.broadcast %7 : vector<1x30xf32> to vector<3x30xf32>
    %17 = arith.addf %15, %16 : vector<3x30xf32>
    %18 = vector.extract_strided_slice %17 {offsets = [0, 12], sizes = [3, 6], strides = [1, 1]} : vector<3x30xf32> to vector<3x6xf32>
    %19 = vector.extract_strided_slice %17 {offsets = [0, 0], sizes = [3, 6], strides = [1, 1]} : vector<3x30xf32> to vector<3x6xf32>
    %20 = vector.extract_strided_slice %17 {offsets = [0, 18], sizes = [3, 6], strides = [1, 1]} : vector<3x30xf32> to vector<3x6xf32>
    %cst_5 = arith.constant dense<0.000000e+00> : vector<3x3xf32>
    %21 = tpu.matmul %19, %18, %cst_5 {dimension_numbers = #tpu.dot_dimension_numbers<[1], [1], [0], [0], [0, 0, 1, 0], [], []>} : vector<3x6xf32>, vector<3x6xf32>, vector<3x3xf32> -> vector<3x3xf32>
    %cst_6 = arith.constant 0.577350259 : f32
    %22 = vector.broadcast %cst_6 : f32 to vector<3x3xf32>
    %23 = arith.mulf %21, %22 : vector<3x3xf32>
    %cst_7 = arith.constant dense<0xFF800000> : vector<3xf32>
    %24 = vector.multi_reduction <maximumf>, %23, %cst_7 [1] : vector<3x3xf32> to vector<3xf32>
    %25 = vector.shape_cast %24 : vector<3xf32> to vector<3x1xf32>
    %26 = vector.broadcast %25 : vector<3x1xf32> to vector<3x3xf32>
    %27 = arith.subf %23, %26 : vector<3x3xf32>
    %28 = math.exp %27 : vector<3x3xf32>
    %cst_8 = arith.constant dense<0.000000e+00> : vector<3xf32>
    %29 = vector.multi_reduction <add>, %28, %cst_8 [1] : vector<3x3xf32> to vector<3xf32>
    %30 = vector.shape_cast %29 : vector<3xf32> to vector<3x1xf32>
    %31 = vector.broadcast %30 : vector<3x1xf32> to vector<3x3xf32>
    %32 = arith.divf %28, %31 : vector<3x3xf32>
    %cst_9 = arith.constant dense<0.000000e+00> : vector<3x6xf32>
    %33 = tpu.matmul %32, %20, %cst_9 {dimension_numbers = #tpu.dot_dimension_numbers<[1], [0], [0], [1], [0, 0, 1, 1], [], []>} : vector<3x3xf32>, vector<3x6xf32>, vector<3x6xf32> -> vector<3x6xf32>
    %34 = vector.extract_strided_slice %17 {offsets = [0, 6], sizes = [3, 6], strides = [1, 1]} : vector<3x30xf32> to vector<3x6xf32>
    %35 = vector.extract_strided_slice %17 {offsets = [0, 24], sizes = [3, 6], strides = [1, 1]} : vector<3x30xf32> to vector<3x6xf32>
    %cst_10 = arith.constant dense<0.000000e+00> : vector<3x3xf32>
    %36 = tpu.matmul %34, %18, %cst_10 {dimension_numbers = #tpu.dot_dimension_numbers<[1], [1], [0], [0], [0, 0, 1, 0], [], []>} : vector<3x6xf32>, vector<3x6xf32>, vector<3x3xf32> -> vector<3x3xf32>
    %cst_11 = arith.constant 0.577350259 : f32
    %37 = vector.broadcast %cst_11 : f32 to vector<3x3xf32>
    %38 = arith.mulf %36, %37 : vector<3x3xf32>
    %cst_12 = arith.constant dense<0xFF800000> : vector<3xf32>
    %39 = vector.multi_reduction <maximumf>, %38, %cst_12 [1] : vector<3x3xf32> to vector<3xf32>
    %40 = vector.shape_cast %39 : vector<3xf32> to vector<3x1xf32>
    %41 = vector.broadcast %40 : vector<3x1xf32> to vector<3x3xf32>
    %42 = arith.subf %38, %41 : vector<3x3xf32>
    %43 = math.exp %42 : vector<3x3xf32>
    %cst_13 = arith.constant dense<0.000000e+00> : vector<3xf32>
    %44 = vector.multi_reduction <add>, %43, %cst_13 [1] : vector<3x3xf32> to vector<3xf32>
    %45 = vector.shape_cast %44 : vector<3xf32> to vector<3x1xf32>
    %46 = vector.broadcast %45 : vector<3x1xf32> to vector<3x3xf32>
    %47 = arith.divf %43, %46 : vector<3x3xf32>
    %cst_14 = arith.constant dense<0.000000e+00> : vector<3x6xf32>
    %48 = tpu.matmul %47, %35, %cst_14 {dimension_numbers = #tpu.dot_dimension_numbers<[1], [0], [0], [1], [0, 0, 1, 1], [], []>} : vector<3x3xf32>, vector<3x6xf32>, vector<3x6xf32> -> vector<3x6xf32>
    %49 = arith.addf %33, %48 : vector<3x6xf32>
    %cst_15 = arith.constant dense<0.000000e+00> : vector<3x6xf32>
    %50 = tpu.matmul %49, %4, %cst_15 {dimension_numbers = #tpu.dot_dimension_numbers<[1], [0], [0], [1], [0, 0, 1, 1], [], []>} : vector<3x6xf32>, vector<6x6xf32>, vector<3x6xf32> -> vector<3x6xf32>
    %51 = vector.broadcast %8 : vector<1x6xf32> to vector<3x6xf32>
    %52 = arith.addf %50, %51 : vector<3x6xf32>
    %53 = arith.addf %0, %52 : vector<3x6xf32>
    %cst_16 = arith.constant dense<0.000000e+00> : vector<3xf32>
    %54 = vector.multi_reduction <add>, %53, %cst_16 [1] : vector<3x6xf32> to vector<3xf32>
    %55 = vector.shape_cast %54 : vector<3xf32> to vector<3x1xf32>
    %cst_17 = arith.constant 6.000000e+00 : f32
    %56 = vector.broadcast %cst_17 : f32 to vector<3x1xf32>
    %57 = arith.divf %55, %56 : vector<3x1xf32>
    %58 = vector.broadcast %57 : vector<3x1xf32> to vector<3x6xf32>
    %59 = arith.subf %53, %58 : vector<3x6xf32>
    %60 = arith.mulf %59, %59 : vector<3x6xf32>
    %cst_18 = arith.constant dense<0.000000e+00> : vector<3xf32>
    %61 = vector.multi_reduction <add>, %60, %cst_18 [1] : vector<3x6xf32> to vector<3xf32>
    %62 = vector.shape_cast %61 : vector<3xf32> to vector<3x1xf32>
    %cst_19 = arith.constant 6.000000e+00 : f32
    %63 = vector.broadcast %cst_19 : f32 to vector<3x1xf32>
    %64 = arith.divf %62, %63 : vector<3x1xf32>
    %65 = vector.broadcast %57 : vector<3x1xf32> to vector<3x6xf32>
    %66 = arith.subf %53, %65 : vector<3x6xf32>
    %cst_20 = arith.constant 9.99999974E-6 : f32
    %67 = vector.broadcast %cst_20 : f32 to vector<3x1xf32>
    %68 = arith.addf %64, %67 : vector<3x1xf32>
    %69 = math.rsqrt %68 : vector<3x1xf32>
    %70 = vector.broadcast %69 : vector<3x1xf32> to vector<3x6xf32>
    %71 = arith.mulf %66, %70 : vector<3x6xf32>
    %72 = vector.broadcast %11 : vector<1x6xf32> to vector<3x6xf32>
    %73 = arith.mulf %71, %72 : vector<3x6xf32>
    %74 = vector.broadcast %12 : vector<1x6xf32> to vector<3x6xf32>
    %75 = arith.addf %73, %74 : vector<3x6xf32>
    %cst_21 = arith.constant dense<0.000000e+00> : vector<3x24xf32>
    %76 = tpu.matmul %75, %5, %cst_21 {dimension_numbers = #tpu.dot_dimension_numbers<[1], [0], [0], [1], [0, 0, 1, 1], [], []>} : vector<3x6xf32>, vector<6x24xf32>, vector<3x24xf32> -> vector<3x24xf32>
    %77 = vector.broadcast %9 : vector<1x24xf32> to vector<3x24xf32>
    %78 = arith.addf %76, %77 : vector<3x24xf32>
    %cst_22 = arith.constant 0.000000e+00 : f32
    %79 = vector.broadcast %cst_22 : f32 to vector<3x24xf32>
    %80 = arith.maximumf %78, %79 : vector<3x24xf32>
    %cst_23 = arith.constant dense<0.000000e+00> : vector<3x6xf32>
    %81 = tpu.matmul %80, %6, %cst_23 {dimension_numbers = #tpu.dot_dimension_numbers<[1], [0], [0], [1], [0, 0, 1, 1], [], []>} : vector<3x24xf32>, vector<24x6xf32>, vector<3x6xf32> -> vector<3x6xf32>
    %82 = vector.broadcast %10 : vector<1x6xf32> to vector<3x6xf32>
    %83 = arith.addf %81, %82 : vector<3x6xf32>
    %84 = arith.addf %75, %83 : vector<3x6xf32>
    %cst_24 = arith.constant dense<0.000000e+00> : vector<3xf32>
    %85 = vector.multi_reduction <add>, %84, %cst_24 [1] : vector<3x6xf32> to vector<3xf32>
    %86 = vector.shape_cast %85 : vector<3xf32> to vector<3x1xf32>
    %cst_25 = arith.constant 6.000000e+00 : f32
    %87 = vector.broadcast %cst_25 : f32 to vector<3x1xf32>
    %88 = arith.divf %86, %87 : vector<3x1xf32>
    %89 = vector.broadcast %88 : vector<3x1xf32> to vector<3x6xf32>
    %90 = arith.subf %84, %89 : vector<3x6xf32>
    %91 = arith.mulf %90, %90 : vector<3x6xf32>
    %cst_26 = arith.constant dense<0.000000e+00> : vector<3xf32>
    %92 = vector.multi_reduction <add>, %91, %cst_26 [1] : vector<3x6xf32> to vector<3xf32>
    %93 = vector.shape_cast %92 : vector<3xf32> to vector<3x1xf32>
    %cst_27 = arith.constant 6.000000e+00 : f32
    %94 = vector.broadcast %cst_27 : f32 to vector<3x1xf32>
    %95 = arith.divf %93, %94 : vector<3x1xf32>
    %96 = vector.broadcast %88 : vector<3x1xf32> to vector<3x6xf32>
    %97 = arith.subf %84, %96 : vector<3x6xf32>
    %cst_28 = arith.constant 9.99999974E-6 : f32
    %98 = vector.broadcast %cst_28 : f32 to vector<3x1xf32>
    %99 = arith.addf %95, %98 : vector<3x1xf32>
    %100 = math.rsqrt %99 : vector<3x1xf32>
    %101 = vector.broadcast %100 : vector<3x1xf32> to vector<3x6xf32>
    %102 = arith.mulf %97, %101 : vector<3x6xf32>
    %103 = vector.broadcast %13 : vector<1x6xf32> to vector<3x6xf32>
    %104 = arith.mulf %102, %103 : vector<3x6xf32>
    %105 = vector.broadcast %14 : vector<1x6xf32> to vector<3x6xf32>
    %106 = arith.addf %104, %105 : vector<3x6xf32>
    %c0_29 = arith.constant 0 : index
    %c0_30 = arith.constant 0 : index
    %107 = vector.load %arg3[%c0_29, %c0_30] : memref<3x6xf32, #tpu.memory_space<vmem>>, vector<3x6xf32>
    tpu.vector_store %arg3[%c0_29, %c0_30], %106 {strides = array<i32>} : memref<3x6xf32, #tpu.memory_space<vmem>>, vector<3x6xf32>,
    return
  }
}

</mosaic_0001>

<llo_original>
// kernel: encoder_block_pallas.1
$region0: #{encoder_block_pallas.1}
  #allocation0 [shape = 'u32[]', space=smem, size = 0x4, offset = 0x4, fixed_abs, tag = 'smem constant byte address 0x4 - core index']
  #allocation1 [shape = 'u32[144,128]{1,0:T(1,128)}', space=vmem, size = 0x12000, scoped, tag = 'internal scratch']
  %s0 = inlined_call_operand.vmem [shape: f32[3,6], index: 0, kind: input, shape index: {}]
  %s1 = inlined_call_operand.vmem [shape: f32[24,66], index: 1, kind: input, shape index: {}]
  %s2 = inlined_call_operand.vmem [shape: f32[8,30], index: 2, kind: input, shape index: {}]
  %s3 = inlined_call_operand.vmem [shape: f32[3,6], index: 3, kind: output, shape index: {}]
  %s4 = sld [smem:[#allocation0]]
  $region22: #{encoder_block_pallas.1} parent=0
    _
  %s6 = ssub.s32 1, %s4
  %s7 = scalar_select 0, %s6, %s4
  // Predicated region
  $region2: #{encoder_block_pallas.1} parent=0 // pred_check
    _
  $region3: #{encoder_block_pallas.1} parent=0 // pred_check_branch
    %9 = sbr.rel (0) target = $region5
  $region4: #{encoder_block_pallas.1} parent=0 // pred_region
    _
  $region5: #{encoder_block_pallas.1} parent=0 // pred_fallthru
    _
  // Predicated region
  $region6: #{encoder_block_pallas.1} parent=0 // pred_check
    _
  $region7: #{encoder_block_pallas.1} parent=0 // pred_check_branch
    %11 = sbr.rel (0) target = $region9
  $region8: #{encoder_block_pallas.1} parent=0 // pred_region
    _
  $region9: #{encoder_block_pallas.1} parent=0 // pred_fallthru
    _
  // Predicated region
  $region10: #{encoder_block_pallas.1} parent=0 // pred_check
    _
  $region11: #{encoder_block_pallas.1} parent=0 // pred_check_branch
    %13 = sbr.rel (0) target = $region13
  $region12: #{encoder_block_pallas.1} parent=0 // pred_region
    _
  $region13: #{encoder_block_pallas.1} parent=0 // pred_fallthru
    _
  %v14 = vld [vmem:[%s0] sm:$0x7]
  %v15 = vld [vmem:[%s1] sm:$0xff]
  %v16 = vld [vmem:[%s1 + $0x8] sm:$0xff]
  %v17 = vld [vmem:[%s1 + $0x10] sm:$0xff]
  %v18 = vld [vmem:[%s2] sm:$0xff]
  %v19 = vlaneseq
  %v20 = vshrl.u32 %v19, 7
  %v21 = vsub.s32 0, %v20
  %v22 = vrot.slane %v18, %v21
  %vm23 = vcmask 48128
  %v25 = vsel %vm23, %v14, 0
  %vm27 = vcmask 1045504
  %v29 = vsel %vm27, %v15, 0
  %31 = vmatprep.subr.mxu0 0.0
  %32 = vmatpush1.msra.mxu0 %v29
  %33 = vmatprep.subr.mxu0 0.0
  %34 = vmatpush1.msra.mxu0 0.0
  %35 = vmatprep.subr.mxu0 0.0
  %36 = vmatpush1.msra.mxu0 0.0
  %37 = vmatprep.subr.mxu0 0.0
  %38 = vmatpush1.msra.mxu0 0.0
  %39 = vmatprep.subr.mxu0 0.0
  %40 = vmatpush1.msra.mxu0 0.0
  %41 = vmatprep.subr.mxu0 0.0
  %42 = vmatpush1.msra.mxu0 0.0
  %43 = vmatprep.subr.mxu0 0.0
  %44 = vmatpush1.msra.mxu0 0.0
  %45 = vmatprep.subr.mxu0 0.0
  %46 = vmatpush1.msra.mxu0 0.0
  %47 = vmatprep.subr.mxu0 0.0
  %48 = vmatpush1.msra.mxu0 0.0
  %49 = vmatprep.subr.mxu0 0.0
  %50 = vmatpush1.msra.mxu0 0.0
  %51 = vmatprep.subr.mxu0 0.0
  %52 = vmatpush1.msra.mxu0 0.0
  %53 = vmatprep.subr.mxu0 0.0
  %54 = vmatpush1.msra.mxu0 0.0
  %55 = vmatprep.subr.mxu0 0.0
  %56 = vmatpush1.msra.mxu0 0.0
  %57 = vmatprep.subr.mxu0 0.0
  %58 = vmatpush1.msra.mxu0 0.0
  %59 = vmatprep.subr.mxu0 0.0
  %60 = vmatpush1.msra.mxu0 0.0
  %61 = vmatprep.subr.mxu0 0.0
  %62 = vmatpush1.msra.mxu0 0.0
  %63 = vmatprep.subr.mxu0 0.0
  %64 = vmatpush1.msra.mxu0 0.0
  %65 = vmatprep.subr.mxu0 0.0
  %66 = vmatpush1.msra.mxu0 0.0
  %67 = vmatprep.subr.mxu0 0.0
  %68 = vmatpush1.msra.mxu0 0.0
  %69 = vmatprep.subr.mxu0 0.0
  %70 = vmatpush1.msra.mxu0 0.0
  %71 = vmatprep.subr.mxu0 0.0
  %72 = vmatpush1.msra.mxu0 0.0
  %73 = vmatprep.subr.mxu0 0.0
  %74 = vmatpush1.msra.mxu0 0.0
  %75 = vmatprep.subr.mxu0 0.0
  %76 = vmatpush1.msra.mxu0 0.0
  %77 = vmatprep.subr.mxu0 0.0
  %78 = vmatpush1.msra.mxu0 0.0
  %79 = vmatprep.subr.mxu0 0.0
  %80 = vmatpush1.msra.mxu0 0.0
  %81 = vmatprep.subr.mxu0 0.0
  %82 = vmatpush1.msra.mxu0 0.0
  %83 = vmatprep.subr.mxu0 0.0
  %84 = vmatpush1.msra.mxu0 0.0
  %85 = vmatprep.subr.mxu0 0.0
  %86 = vmatpush1.msra.mxu0 0.0
  %87 = vmatprep.subr.mxu0 0.0
  %88 = vmatpush1.msra.mxu0 0.0
  %89 = vmatprep.subr.mxu0 0.0
  %90 = vmatpush1.msra.mxu0 0.0
  %91 = vmatprep.subr.mxu0 0.0
  %92 = vmatpush1.msra.mxu0 0.0
  %93 = vmatprep.subr.mxu0 0.0
  %94 = vmatpush1.msra.mxu0 0.0
  %95 = vmatprep.mubr.f32.mxu0 0.0
  %96 = vmatmul.mubr.f32.gmra.mrb[0].mxu0 %v25
  %v97 = vpop.f32.mrb[0].mxu0
  %v98 = vadd.f32 %v22, %v97
  %v99 = vpop.f32.mrb[0].mxu0
  %100 = vdwg.mxu0
  %102 = vrot.lane.b32.xlu0 %v98, 116
  %v103 = vpop.permute.xlu0 %102
  %v104 = vsel %vm23, %v98, 0
  %v106 = vsel %vm23, %v103, 0
  %108 = vmatprep.subr.mxu0 0.0
  %109 = vmatpush1.xpose.msra.mxu0 %v106
  %110 = vmatprep.subr.mxu0 0.0
  %111 = vmatpush1.xpose.msra.mxu0 0.0
  %112 = vmatprep.subr.mxu0 0.0
  %113 = vmatpush1.xpose.msra.mxu0 0.0
  %114 = vmatprep.subr.mxu0 0.0
  %115 = vmatpush1.xpose.msra.mxu0 0.0
  %116 = vmatprep.subr.mxu0 0.0
  %117 = vmatpush1.xpose.msra.mxu0 0.0
  %118 = vmatprep.subr.mxu0 0.0
  %119 = vmatpush1.xpose.msra.mxu0 0.0
  %120 = vmatprep.subr.mxu0 0.0
  %121 = vmatpush1.xpose.msra.mxu0 0.0
  %122 = vmatprep.subr.mxu0 0.0
  %123 = vmatpush1.xpose.msra.mxu0 0.0
  %124 = vmatprep.subr.mxu0 0.0
  %125 = vmatpush1.xpose.msra.mxu0 0.0
  %126 = vmatprep.subr.mxu0 0.0
  %127 = vmatpush1.xpose.msra.mxu0 0.0
  %128 = vmatprep.subr.mxu0 0.0
  %129 = vmatpush1.xpose.msra.mxu0 0.0
  %130 = vmatprep.subr.mxu0 0.0
  %131 = vmatpush1.xpose.msra.mxu0 0.0
  %132 = vmatprep.subr.mxu0 0.0
  %133 = vmatpush1.xpose.msra.mxu0 0.0
  %134 = vmatprep.subr.mxu0 0.0
  %135 = vmatpush1.xpose.msra.mxu0 0.0
  %136 = vmatprep.subr.mxu0 0.0
  %137 = vmatpush1.xpose.msra.mxu0 0.0
  %138 = vmatprep.subr.mxu0 0.0
  %139 = vmatpush1.xpose.msra.mxu0 0.0
  %140 = vmatprep.subr.mxu0 0.0
  %141 = vmatpush1.xpose.msra.mxu0 0.0
  %142 = vmatprep.subr.mxu0 0.0
  %143 = vmatpush1.xpose.msra.mxu0 0.0
  %144 = vmatprep.subr.mxu0 0.0
  %145 = vmatpush1.xpose.msra.mxu0 0.0
  %146 = vmatprep.subr.mxu0 0.0
  %147 = vmatpush1.xpose.msra.mxu0 0.0
  %148 = vmatprep.subr.mxu0 0.0
  %149 = vmatpush1.xpose.msra.mxu0 0.0
  %150 = vmatprep.subr.mxu0 0.0
  %151 = vmatpush1.xpose.msra.mxu0 0.0
  %152 = vmatprep.subr.mxu0 0.0
  %153 = vmatpush1.xpose.msra.mxu0 0.0
  %154 = vmatprep.subr.mxu0 0.0
  %155 = vmatpush1.xpose.msra.mxu0 0.0
  %156 = vmatprep.subr.mxu0 0.0
  %157 = vmatpush1.xpose.msra.mxu0 0.0
  %158 = vmatprep.subr.mxu0 0.0
  %159 = vmatpush1.xpose.msra.mxu0 0.0
  %160 = vmatprep.subr.mxu0 0.0
  %161 = vmatpush1.xpose.msra.mxu0 0.0
  %162 = vmatprep.subr.mxu0 0.0
  %163 = vmatpush1.xpose.msra.mxu0 0.0
  %164 = vmatprep.subr.mxu0 0.0
  %165 = vmatpush1.xpose.msra.mxu0 0.0
  %166 = vmatprep.subr.mxu0 0.0
  %167 = vmatpush1.xpose.msra.mxu0 0.0
  %168 = vmatprep.subr.mxu0 0.0
  %169 = vmatpush1.xpose.msra.mxu0 0.0
  %170 = vmatprep.subr.mxu0 0.0
  %171 = vmatpush1.xpose.msra.mxu0 0.0
  %172 = vmatprep.mubr.f32.mxu0 0.0
  %173 = vmatmul.mubr.f32.gmra.mrb[0].mxu0 %v104
  %v174 = vpop.f32.mrb[0].mxu0
  %v175 = vadd.f32 0.0, %v174
  %v176 = vpop.f32.mrb[0].mxu0
  %177 = vdwg.mxu0
  %v178 = vmul.f32 %v175, 0.57735026
  %vm179 = vcmask 18432
  %v180 = vsel %vm179, %v178, -inf
  %181 = vmax.xlane.f32.xlu0 %v180
  %v182 = vpop.xlane.xlu0 %181
  %v183 = vsub.f32 %v178, %v182
  %v184 = vmul.f32 %v183, 1.442695
  %v185 = vpow.pop %v184
  %v186 = vsel %vm179, %v185, 0.0
  %187 = vadd.xlane.f32.xlu0 %v186
  %v188 = vpop.xlane.xlu0 %187
  %v189 = vrcp.pop %v188
  %v190 = vmul.f32 %v185, %v189
  %191 = vrot.lane.b32.xlu0 %v98, 122
  %v192 = vpop.permute.xlu0 %191
  %v193 = vsel %vm23, %v192, 0
  %195 = vmatprep.subr.mxu0 0.0
  %196 = vmatpush1.xpose.msra.mxu0 %v106
  %197 = vmatprep.subr.mxu0 0.0
  %198 = vmatpush1.xpose.msra.mxu0 0.0
  %199 = vmatprep.subr.mxu0 0.0
  %200 = vmatpush1.xpose.msra.mxu0 0.0
  %201 = vmatprep.subr.mxu0 0.0
  %202 = vmatpush1.xpose.msra.mxu0 0.0
  %203 = vmatprep.subr.mxu0 0.0
  %204 = vmatpush1.xpose.msra.mxu0 0.0
  %205 = vmatprep.subr.mxu0 0.0
  %206 = vmatpush1.xpose.msra.mxu0 0.0
  %207 = vmatprep.subr.mxu0 0.0
  %208 = vmatpush1.xpose.msra.mxu0 0.0
  %209 = vmatprep.subr.mxu0 0.0
  %210 = vmatpush1.xpose.msra.mxu0 0.0
  %211 = vmatprep.subr.mxu0 0.0
  %212 = vmatpush1.xpose.msra.mxu0 0.0
  %213 = vmatprep.subr.mxu0 0.0
  %214 = vmatpush1.xpose.msra.mxu0 0.0
  %215 = vmatprep.subr.mxu0 0.0
  %216 = vmatpush1.xpose.msra.mxu0 0.0
  %217 = vmatprep.subr.mxu0 0.0
  %218 = vmatpush1.xpose.msra.mxu0 0.0
  %219 = vmatprep.subr.mxu0 0.0
  %220 = vmatpush1.xpose.msra.mxu0 0.0
  %221 = vmatprep.subr.mxu0 0.0
  %222 = vmatpush1.xpose.msra.mxu0 0.0
  %223 = vmatprep.subr.mxu0 0.0
  %224 = vmatpush1.xpose.msra.mxu0 0.0
  %225 = vmatprep.subr.mxu0 0.0
  %226 = vmatpush1.xpose.msra.mxu0 0.0
  %227 = vmatprep.subr.mxu0 0.0
  %228 = vmatpush1.xpose.msra.mxu0 0.0
  %229 = vmatprep.subr.mxu0 0.0
  %230 = vmatpush1.xpose.msra.mxu0 0.0
  %231 = vmatprep.subr.mxu0 0.0
  %232 = vmatpush1.xpose.msra.mxu0 0.0
  %233 = vmatprep.subr.mxu0 0.0
  %234 = vmatpush1.xpose.msra.mxu0 0.0
  %235 = vmatprep.subr.mxu0 0.0
  %236 = vmatpush1.xpose.msra.mxu0 0.0
  %237 = vmatprep.subr.mxu0 0.0
  %238 = vmatpush1.xpose.msra.mxu0 0.0
  %239 = vmatprep.subr.mxu0 0.0
  %240 = vmatpush1.xpose.msra.mxu0 0.0
  %241 = vmatprep.subr.mxu0 0.0
  %242 = vmatpush1.xpose.msra.mxu0 0.0
  %243 = vmatprep.subr.mxu0 0.0
  %244 = vmatpush1.xpose.msra.mxu0 0.0
  %245 = vmatprep.subr.mxu0 0.0
  %246 = vmatpush1.xpose.msra.mxu0 0.0
  %247 = vmatprep.subr.mxu0 0.0
  %248 = vmatpush1.xpose.msra.mxu0 0.0
  %249 = vmatprep.subr.mxu0 0.0
  %250 = vmatpush1.xpose.msra.mxu0 0.0
  %251 = vmatprep.subr.mxu0 0.0
  %252 = vmatpush1.xpose.msra.mxu0 0.0
  %253 = vmatprep.subr.mxu0 0.0
  %254 = vmatpush1.xpose.msra.mxu0 0.0
  %255 = vmatprep.subr.mxu0 0.0
  %256 = vmatpush1.xpose.msra.mxu0 0.0
  %257 = vmatprep.subr.mxu0 0.0
  %258 = vmatpush1.xpose.msra.mxu0 0.0
  %259 = vmatprep.mubr.f32.mxu0 0.0
  %260 = vmatmul.mubr.f32.gmra.mrb[0].mxu0 %v193
  %v261 = vpop.f32.mrb[0].mxu0
  %v262 = vadd.f32 0.0, %v261
  %v263 = vpop.f32.mrb[0].mxu0
  %264 = vdwg.mxu0
  %v265 = vmul.f32 %v262, 0.57735026
  %v266 = vsel %vm179, %v265, -inf
  %267 = vmax.xlane.f32.xlu0 %v266
  %v268 = vpop.xlane.xlu0 %267
  %v269 = vsub.f32 %v265, %v268
  %v270 = vmul.f32 %v269, 1.442695
  %v271 = vpow.pop %v270
  %v272 = vsel %vm179, %v271, 0.0
  %273 = vadd.xlane.f32.xlu0 %v272
  %v274 = vpop.xlane.xlu0 %273
  %v275 = vrcp.pop %v274
  %v276 = vmul.f32 %v271, %v275
  %277 = vrot.lane.b32.xlu0 %v98, 104
  %v278 = vpop.permute.xlu0 %277
  %vm279 = vcmask 23552
  %v281 = vsel %vm279, %v276, 0
  %vm283 = vcmask 1042432
  %v284 = vsel %vm283, %v278, 0
  %286 = vmatprep.subr.mxu0 0.0
  %287 = vmatpush1.msra.mxu0 %v284
  %288 = vmatprep.subr.mxu0 0.0
  %289 = vmatpush1.msra.mxu0 0.0
  %290 = vmatprep.subr.mxu0 0.0
  %291 = vmatpush1.msra.mxu0 0.0
  %292 = vmatprep.subr.mxu0 0.0
  %293 = vmatpush1.msra.mxu0 0.0
  %294 = vmatprep.subr.mxu0 0.0
  %295 = vmatpush1.msra.mxu0 0.0
  %296 = vmatprep.subr.mxu0 0.0
  %297 = vmatpush1.msra.mxu0 0.0
  %298 = vmatprep.subr.mxu0 0.0
  %299 = vmatpush1.msra.mxu0 0.0
  %300 = vmatprep.subr.mxu0 0.0
  %301 = vmatpush1.msra.mxu0 0.0
  %302 = vmatprep.subr.mxu0 0.0
  %303 = vmatpush1.msra.mxu0 0.0
  %304 = vmatprep.subr.mxu0 0.0
  %305 = vmatpush1.msra.mxu0 0.0
  %306 = vmatprep.subr.mxu0 0.0
  %307 = vmatpush1.msra.mxu0 0.0
  %308 = vmatprep.subr.mxu0 0.0
  %309 = vmatpush1.msra.mxu0 0.0
  %310 = vmatprep.subr.mxu0 0.0
  %311 = vmatpush1.msra.mxu0 0.0
  %312 = vmatprep.subr.mxu0 0.0
  %313 = vmatpush1.msra.mxu0 0.0
  %314 = vmatprep.subr.mxu0 0.0
  %315 = vmatpush1.msra.mxu0 0.0
  %316 = vmatprep.subr.mxu0 0.0
  %317 = vmatpush1.msra.mxu0 0.0
  %318 = vmatprep.subr.mxu0 0.0
  %319 = vmatpush1.msra.mxu0 0.0
  %320 = vmatprep.subr.mxu0 0.0
  %321 = vmatpush1.msra.mxu0 0.0
  %322 = vmatprep.subr.mxu0 0.0
  %323 = vmatpush1.msra.mxu0 0.0
  %324 = vmatprep.subr.mxu0 0.0
  %325 = vmatpush1.msra.mxu0 0.0
  %326 = vmatprep.subr.mxu0 0.0
  %327 = vmatpush1.msra.mxu0 0.0
  %328 = vmatprep.subr.mxu0 0.0
  %329 = vmatpush1.msra.mxu0 0.0
  %330 = vmatprep.subr.mxu0 0.0
  %331 = vmatpush1.msra.mxu0 0.0
  %332 = vmatprep.subr.mxu0 0.0
  %333 = vmatpush1.msra.mxu0 0.0
  %334 = vmatprep.subr.mxu0 0.0
  %335 = vmatpush1.msra.mxu0 0.0
  %336 = vmatprep.subr.mxu0 0.0
  %337 = vmatpush1.msra.mxu0 0.0
  %338 = vmatprep.subr.mxu0 0.0
  %339 = vmatpush1.msra.mxu0 0.0
  %340 = vmatprep.subr.mxu0 0.0
  %341 = vmatpush1.msra.mxu0 0.0
  %342 = vmatprep.subr.mxu0 0.0
  %343 = vmatpush1.msra.mxu0 0.0
  %344 = vmatprep.subr.mxu0 0.0
  %345 = vmatpush1.msra.mxu0 0.0
  %346 = vmatprep.subr.mxu0 0.0
  %347 = vmatpush1.msra.mxu0 0.0
  %348 = vmatprep.subr.mxu0 0.0
  %349 = vmatpush1.msra.mxu0 0.0
  %350 = vmatprep.mubr.f32.mxu0 0.0
  %351 = vmatmul.mubr.f32.gmra.mrb[0].mxu0 %v281
  %v352 = vpop.f32.mrb[0].mxu0
  %v353 = vadd.f32 0.0, %v352
  %v354 = vpop.f32.mrb[0].mxu0
  %355 = vdwg.mxu0
  %356 = vrot.lane.b32.xlu0 %v98, 110
  %v357 = vpop.permute.xlu0 %356
  %v359 = vsel %vm279, %v190, 0
  %v361 = vsel %vm283, %v357, 0
  %363 = vmatprep.subr.mxu0 0.0
  %364 = vmatpush1.msra.mxu0 %v361
  %365 = vmatprep.subr.mxu0 0.0
  %366 = vmatpush1.msra.mxu0 0.0
  %367 = vmatprep.subr.mxu0 0.0
  %368 = vmatpush1.msra.mxu0 0.0
  %369 = vmatprep.subr.mxu0 0.0
  %370 = vmatpush1.msra.mxu0 0.0
  %371 = vmatprep.subr.mxu0 0.0
  %372 = vmatpush1.msra.mxu0 0.0
  %373 = vmatprep.subr.mxu0 0.0
  %374 = vmatpush1.msra.mxu0 0.0
  %375 = vmatprep.subr.mxu0 0.0
  %376 = vmatpush1.msra.mxu0 0.0
  %377 = vmatprep.subr.mxu0 0.0
  %378 = vmatpush1.msra.mxu0 0.0
  %379 = vmatprep.subr.mxu0 0.0
  %380 = vmatpush1.msra.mxu0 0.0
  %381 = vmatprep.subr.mxu0 0.0
  %382 = vmatpush1.msra.mxu0 0.0
  %383 = vmatprep.subr.mxu0 0.0
  %384 = vmatpush1.msra.mxu0 0.0
  %385 = vmatprep.subr.mxu0 0.0
  %386 = vmatpush1.msra.mxu0 0.0
  %387 = vmatprep.subr.mxu0 0.0
  %388 = vmatpush1.msra.mxu0 0.0
  %389 = vmatprep.subr.mxu0 0.0
  %390 = vmatpush1.msra.mxu0 0.0
  %391 = vmatprep.subr.mxu0 0.0
  %392 = vmatpush1.msra.mxu0 0.0
  %393 = vmatprep.subr.mxu0 0.0
  %394 = vmatpush1.msra.mxu0 0.0
  %395 = vmatprep.subr.mxu0 0.0
  %396 = vmatpush1.msra.mxu0 0.0
  %397 = vmatprep.subr.mxu0 0.0
  %398 = vmatpush1.msra.mxu0 0.0
  %399 = vmatprep.subr.mxu0 0.0
  %400 = vmatpush1.msra.mxu0 0.0
  %401 = vmatprep.subr.mxu0 0.0
  %402 = vmatpush1.msra.mxu0 0.0
  %403 = vmatprep.subr.mxu0 0.0
  %404 = vmatpush1.msra.mxu0 0.0
  %405 = vmatprep.subr.mxu0 0.0
  %406 = vmatpush1.msra.mxu0 0.0
  %407 = vmatprep.subr.mxu0 0.0
  %408 = vmatpush1.msra.mxu0 0.0
  %409 = vmatprep.subr.mxu0 0.0
  %410 = vmatpush1.msra.mxu0 0.0
  %411 = vmatprep.subr.mxu0 0.0
  %412 = vmatpush1.msra.mxu0 0.0
  %413 = vmatprep.subr.mxu0 0.0
  %414 = vmatpush1.msra.mxu0 0.0
  %415 = vmatprep.subr.mxu0 0.0
  %416 = vmatpush1.msra.mxu0 0.0
  %417 = vmatprep.subr.mxu0 0.0
  %418 = vmatpush1.msra.mxu0 0.0
  %419 = vmatprep.subr.mxu0 0.0
  %420 = vmatpush1.msra.mxu0 0.0
  %421 = vmatprep.subr.mxu0 0.0
  %422 = vmatpush1.msra.mxu0 0.0
  %423 = vmatprep.subr.mxu0 0.0
  %424 = vmatpush1.msra.mxu0 0.0
  %425 = vmatprep.subr.mxu0 0.0
  %426 = vmatpush1.msra.mxu0 0.0
  %427 = vmatprep.mubr.f32.mxu0 0.0
  %428 = vmatmul.mubr.f32.gmra.mrb[0].mxu0 %v359
  %v429 = vpop.f32.mrb[0].mxu0
  %v430 = vadd.f32 %v353, %v429
  %v431 = vpop.f32.mrb[0].mxu0
  %432 = vdwg.mxu0
  %v433 = vlaneseq
  %v434 = vshrl.u32 %v433, 7
  %v435 = vsub.s32 1, %v434
  %v436 = vrot.slane %v18, %v435
  %437 = vrot.lane.b32.xlu0 %v15, 98
  %v438 = vpop.permute.xlu0 %437
  %v440 = vsel %vm23, %v430, 0
  %v442 = vsel %vm27, %v438, 0
  %444 = vmatprep.subr.mxu0 0.0
  %445 = vmatpush1.msra.mxu0 %v442
  %446 = vmatprep.subr.mxu0 0.0
  %447 = vmatpush1.msra.mxu0 0.0
  %448 = vmatprep.subr.mxu0 0.0
  %449 = vmatpush1.msra.mxu0 0.0
  %450 = vmatprep.subr.mxu0 0.0
  %451 = vmatpush1.msra.mxu0 0.0
  %452 = vmatprep.subr.mxu0 0.0
  %453 = vmatpush1.msra.mxu0 0.0
  %454 = vmatprep.subr.mxu0 0.0
  %455 = vmatpush1.msra.mxu0 0.0
  %456 = vmatprep.subr.mxu0 0.0
  %457 = vmatpush1.msra.mxu0 0.0
  %458 = vmatprep.subr.mxu0 0.0
  %459 = vmatpush1.msra.mxu0 0.0
  %460 = vmatprep.subr.mxu0 0.0
  %461 = vmatpush1.msra.mxu0 0.0
  %462 = vmatprep.subr.mxu0 0.0
  %463 = vmatpush1.msra.mxu0 0.0
  %464 = vmatprep.subr.mxu0 0.0
  %465 = vmatpush1.msra.mxu0 0.0
  %466 = vmatprep.subr.mxu0 0.0
  %467 = vmatpush1.msra.mxu0 0.0
  %468 = vmatprep.subr.mxu0 0.0
  %469 = vmatpush1.msra.mxu0 0.0
  %470 = vmatprep.subr.mxu0 0.0
  %471 = vmatpush1.msra.mxu0 0.0
  %472 = vmatprep.subr.mxu0 0.0
  %473 = vmatpush1.msra.mxu0 0.0
  %474 = vmatprep.subr.mxu0 0.0
  %475 = vmatpush1.msra.mxu0 0.0
  %476 = vmatprep.subr.mxu0 0.0
  %477 = vmatpush1.msra.mxu0 0.0
  %478 = vmatprep.subr.mxu0 0.0
  %479 = vmatpush1.msra.mxu0 0.0
  %480 = vmatprep.subr.mxu0 0.0
  %481 = vmatpush1.msra.mxu0 0.0
  %482 = vmatprep.subr.mxu0 0.0
  %483 = vmatpush1.msra.mxu0 0.0
  %484 = vmatprep.subr.mxu0 0.0
  %485 = vmatpush1.msra.mxu0 0.0
  %486 = vmatprep.subr.mxu0 0.0
  %487 = vmatpush1.msra.mxu0 0.0
  %488 = vmatprep.subr.mxu0 0.0
  %489 = vmatpush1.msra.mxu0 0.0
  %490 = vmatprep.subr.mxu0 0.0
  %491 = vmatpush1.msra.mxu0 0.0
  %492 = vmatprep.subr.mxu0 0.0
  %493 = vmatpush1.msra.mxu0 0.0
  %494 = vmatprep.subr.mxu0 0.0
  %495 = vmatpush1.msra.mxu0 0.0
  %496 = vmatprep.subr.mxu0 0.0
  %497 = vmatpush1.msra.mxu0 0.0
  %498 = vmatprep.subr.mxu0 0.0
  %499 = vmatpush1.msra.mxu0 0.0
  %500 = vmatprep.subr.mxu0 0.0
  %501 = vmatpush1.msra.mxu0 0.0
  %502 = vmatprep.subr.mxu0 0.0
  %503 = vmatpush1.msra.mxu0 0.0
  %504 = vmatprep.subr.mxu0 0.0
  %505 = vmatpush1.msra.mxu0 0.0
  %506 = vmatprep.subr.mxu0 0.0
  %507 = vmatpush1.msra.mxu0 0.0
  %508 = vmatprep.mubr.f32.mxu0 0.0
  %509 = vmatmul.mubr.f32.gmra.mrb[0].mxu0 %v440
  %v510 = vpop.f32.mrb[0].mxu0
  %v511 = vadd.f32 %v436, %v510
  %v512 = vpop.f32.mrb[0].mxu0
  %513 = vdwg.mxu0
  %v514 = vadd.f32 %v14, %v511
  %vm515 = vcmask 43008
  %v516 = vsel %vm515, %v514, 0.0
  %517 = vadd.xlane.f32.xlu0 %v516
  %v518 = vpop.xlane.xlu0 %517
  %v519 = vrcp.pop 6.0
  %v520 = vmul.f32 %v518, %v519
  %v521 = vsub.f32 %v514, %v520
  %v522 = vmul.f32 %v521, %v521
  %v523 = vsel %vm515, %v522, 0.0
  %524 = vadd.xlane.f32.xlu0 %v523
  %v525 = vpop.xlane.xlu0 %524
  %v526 = vmul.f32 %v525, %v519
  %v527 = vadd.f32 %v526, 1e-05
  %v528 = vrsqrt.pop %v527
  %v529 = vmul.f32 %v521, %v528
  %v530 = vlaneseq
  %v531 = vshrl.u32 %v530, 7
  %v532 = vsub.s32 4, %v531
  %v533 = vrot.slane %v18, %v532
  %v534 = vmul.f32 %v529, %v533
  %v535 = vlaneseq
  %v536 = vshrl.u32 %v535, 7
  %v537 = vsub.s32 5, %v536
  %v538 = vrot.slane %v18, %v537
  %v539 = vadd.f32 %v534, %v538
  %v540 = vlaneseq
  %v541 = vshrl.u32 %v540, 7
  %v542 = vsub.s32 2, %v541
  %v543 = vrot.slane %v18, %v542
  %544 = vrot.lane.b32.xlu0 %v15, 92
  %v545 = vpop.permute.xlu0 %544
  %v547 = vsel %vm23, %v539, 0
  %v549 = vsel %vm27, %v545, 0
  %551 = vmatprep.subr.mxu0 0.0
  %552 = vmatpush1.msra.mxu0 %v549
  %553 = vmatprep.subr.mxu0 0.0
  %554 = vmatpush1.msra.mxu0 0.0
  %555 = vmatprep.subr.mxu0 0.0
  %556 = vmatpush1.msra.mxu0 0.0
  %557 = vmatprep.subr.mxu0 0.0
  %558 = vmatpush1.msra.mxu0 0.0
  %559 = vmatprep.subr.mxu0 0.0
  %560 = vmatpush1.msra.mxu0 0.0
  %561 = vmatprep.subr.mxu0 0.0
  %562 = vmatpush1.msra.mxu0 0.0
  %563 = vmatprep.subr.mxu0 0.0
  %564 = vmatpush1.msra.mxu0 0.0
  %565 = vmatprep.subr.mxu0 0.0
  %566 = vmatpush1.msra.mxu0 0.0
  %567 = vmatprep.subr.mxu0 0.0
  %568 = vmatpush1.msra.mxu0 0.0
  %569 = vmatprep.subr.mxu0 0.0
  %570 = vmatpush1.msra.mxu0 0.0
  %571 = vmatprep.subr.mxu0 0.0
  %572 = vmatpush1.msra.mxu0 0.0
  %573 = vmatprep.subr.mxu0 0.0
  %574 = vmatpush1.msra.mxu0 0.0
  %575 = vmatprep.subr.mxu0 0.0
  %576 = vmatpush1.msra.mxu0 0.0
  %577 = vmatprep.subr.mxu0 0.0
  %578 = vmatpush1.msra.mxu0 0.0
  %579 = vmatprep.subr.mxu0 0.0
  %580 = vmatpush1.msra.mxu0 0.0
  %581 = vmatprep.subr.mxu0 0.0
  %582 = vmatpush1.msra.mxu0 0.0
  %583 = vmatprep.subr.mxu0 0.0
  %584 = vmatpush1.msra.mxu0 0.0
  %585 = vmatprep.subr.mxu0 0.0
  %586 = vmatpush1.msra.mxu0 0.0
  %587 = vmatprep.subr.mxu0 0.0
  %588 = vmatpush1.msra.mxu0 0.0
  %589 = vmatprep.subr.mxu0 0.0
  %590 = vmatpush1.msra.mxu0 0.0
  %591 = vmatprep.subr.mxu0 0.0
  %592 = vmatpush1.msra.mxu0 0.0
  %593 = vmatprep.subr.mxu0 0.0
  %594 = vmatpush1.msra.mxu0 0.0
  %595 = vmatprep.subr.mxu0 0.0
  %596 = vmatpush1.msra.mxu0 0.0
  %597 = vmatprep.subr.mxu0 0.0
  %598 = vmatpush1.msra.mxu0 0.0
  %599 = vmatprep.subr.mxu0 0.0
  %600 = vmatpush1.msra.mxu0 0.0
  %601 = vmatprep.subr.mxu0 0.0
  %602 = vmatpush1.msra.mxu0 0.0
  %603 = vmatprep.subr.mxu0 0.0
  %604 = vmatpush1.msra.mxu0 0.0
  %605 = vmatprep.subr.mxu0 0.0
  %606 = vmatpush1.msra.mxu0 0.0
  %607 = vmatprep.subr.mxu0 0.0
  %608 = vmatpush1.msra.mxu0 0.0
  %609 = vmatprep.subr.mxu0 0.0
  %610 = vmatpush1.msra.mxu0 0.0
  %611 = vmatprep.subr.mxu0 0.0
  %612 = vmatpush1.msra.mxu0 0.0
  %613 = vmatprep.subr.mxu0 0.0
  %614 = vmatpush1.msra.mxu0 0.0
  %615 = vmatprep.mubr.f32.mxu0 0.0
  %616 = vmatmul.mubr.f32.gmra.mrb[0].mxu0 %v547
  %v617 = vpop.f32.mrb[0].mxu0
  %v618 = vadd.f32 %v543, %v617
  %v619 = vpop.f32.mrb[0].mxu0
  %620 = vdwg.mxu0
  %v621 = vmax.f32 %v618, 0.0
  %v622 = vlaneseq
  %v623 = vshrl.u32 %v622, 7
  %v624 = vsub.s32 3, %v623
  %v625 = vrot.slane %v18, %v624
  %628 = vrot.lane.b32.xlu0 %v15, 68
  %v629 = vpop.permute.xlu0 %628
  %630 = vrot.lane.b32.xlu0 %v16, 68
  %v631 = vpop.permute.xlu0 %630
  %632 = vrot.lane.b32.xlu0 %v17, 68
  %v633 = vpop.permute.xlu0 %632
  %vm637 = vcmask 195584
  %v639 = vsel %vm637, %v621, 0
  %641 = vmatprep.subr.mxu0 0.0
  %642 = vmatpush1.msra.mxu0 %v629
  %643 = vmatprep.subr.mxu0 0.0
  %644 = vmatpush1.msra.mxu0 %v631
  %645 = vmatprep.subr.mxu0 0.0
  %646 = vmatpush1.msra.mxu0 %v633
  %647 = vmatprep.subr.mxu0 0.0
  %648 = vmatpush1.msra.mxu0 0.0
  %649 = vmatprep.subr.mxu0 0.0
  %650 = vmatpush1.msra.mxu0 0.0
  %651 = vmatprep.subr.mxu0 0.0
  %652 = vmatpush1.msra.mxu0 0.0
  %653 = vmatprep.subr.mxu0 0.0
  %654 = vmatpush1.msra.mxu0 0.0
  %655 = vmatprep.subr.mxu0 0.0
  %656 = vmatpush1.msra.mxu0 0.0
  %657 = vmatprep.subr.mxu0 0.0
  %658 = vmatpush1.msra.mxu0 0.0
  %659 = vmatprep.subr.mxu0 0.0
  %660 = vmatpush1.msra.mxu0 0.0
  %661 = vmatprep.subr.mxu0 0.0
  %662 = vmatpush1.msra.mxu0 0.0
  %663 = vmatprep.subr.mxu0 0.0
  %664 = vmatpush1.msra.mxu0 0.0
  %665 = vmatprep.subr.mxu0 0.0
  %666 = vmatpush1.msra.mxu0 0.0
  %667 = vmatprep.subr.mxu0 0.0
  %668 = vmatpush1.msra.mxu0 0.0
  %669 = vmatprep.subr.mxu0 0.0
  %670 = vmatpush1.msra.mxu0 0.0
  %671 = vmatprep.subr.mxu0 0.0
  %672 = vmatpush1.msra.mxu0 0.0
  %673 = vmatprep.subr.mxu0 0.0
  %674 = vmatpush1.msra.mxu0 0.0
  %675 = vmatprep.subr.mxu0 0.0
  %676 = vmatpush1.msra.mxu0 0.0
  %677 = vmatprep.subr.mxu0 0.0
  %678 = vmatpush1.msra.mxu0 0.0
  %679 = vmatprep.subr.mxu0 0.0
  %680 = vmatpush1.msra.mxu0 0.0
  %681 = vmatprep.subr.mxu0 0.0
  %682 = vmatpush1.msra.mxu0 0.0
  %683 = vmatprep.subr.mxu0 0.0
  %684 = vmatpush1.msra.mxu0 0.0
  %685 = vmatprep.subr.mxu0 0.0
  %686 = vmatpush1.msra.mxu0 0.0
  %687 = vmatprep.subr.mxu0 0.0
  %688 = vmatpush1.msra.mxu0 0.0
  %689 = vmatprep.subr.mxu0 0.0
  %690 = vmatpush1.msra.mxu0 0.0
  %691 = vmatprep.subr.mxu0 0.0
  %692 = vmatpush1.msra.mxu0 0.0
  %693 = vmatprep.subr.mxu0 0.0
  %694 = vmatpush1.msra.mxu0 0.0
  %695 = vmatprep.subr.mxu0 0.0
  %696 = vmatpush1.msra.mxu0 0.0
  %697 = vmatprep.subr.mxu0 0.0
  %698 = vmatpush1.msra.mxu0 0.0
  %699 = vmatprep.subr.mxu0 0.0
  %700 = vmatpush1.msra.mxu0 0.0
  %701 = vmatprep.subr.mxu0 0.0
  %702 = vmatpush1.msra.mxu0 0.0
  %703 = vmatprep.subr.mxu0 0.0
  %704 = vmatpush1.msra.mxu0 0.0
  %705 = vmatprep.mubr.f32.mxu0 0.0
  %706 = vmatmul.mubr.f32.gmra.mrb[0].mxu0 %v639
  %v707 = vpop.f32.mrb[0].mxu0
  %v708 = vadd.f32 %v625, %v707
  %v709 = vpop.f32.mrb[0].mxu0
  %710 = vdwg.mxu0
  %v711 = vadd.f32 %v539, %v708
  %v712 = vsel %vm515, %v711, 0.0
  %713 = vadd.xlane.f32.xlu0 %v712
  %v714 = vpop.xlane.xlu0 %713
  %v715 = vmul.f32 %v714, %v519
  %v716 = vsub.f32 %v711, %v715
  %v717 = vmul.f32 %v716, %v716
  %v718 = vsel %vm515, %v717, 0.0
  %719 = vadd.xlane.f32.xlu0 %v718
  %v720 = vpop.xlane.xlu0 %719
  %v721 = vmul.f32 %v720, %v519
  %v722 = vadd.f32 %v721, 1e-05
  %v723 = vrsqrt.pop %v722
  %v724 = vmul.f32 %v716, %v723
  %v725 = vlaneseq
  %v726 = vshrl.u32 %v725, 7
  %v727 = vsub.s32 6, %v726
  %v728 = vrot.slane %v18, %v727
  %v729 = vmul.f32 %v724, %v728
  %v730 = vlaneseq
  %v731 = vshrl.u32 %v730, 7
  %v732 = vsub.s32 7, %v731
  %v733 = vrot.slane %v18, %v732
  %v734 = vadd.f32 %v729, %v733
  %735 = vst.msk [vmem:[%s3] sm:$0x7] %vm515, %v734
  // Predicated region
  $region14: #{encoder_block_pallas.1} parent=0 // pred_check
    _
  $region15: #{encoder_block_pallas.1} parent=0 // pred_check_branch
    %737 = sbr.rel (0) target = $region17
  $region16: #{encoder_block_pallas.1} parent=0 // pred_region
    _
  $region17: #{encoder_block_pallas.1} parent=0 // pred_fallthru
    _
  // Predicated region
  $region18: #{encoder_block_pallas.1} parent=0 // pred_check
    _
  $region19: #{encoder_block_pallas.1} parent=0 // pred_check_branch
    %739 = sbr.rel (0) target = $region21
  $region20: #{encoder_block_pallas.1} parent=0 // pred_region
    _
  $region21: #{encoder_block_pallas.1} parent=0 // pred_fallthru
    _

</llo_original>
